<compile_context>
chip_gen: v7x
topology: tpu7x:2x2x1
jax: 0.10.0
libtpu: 0.0.40
codegen_flags: <defaults>
</compile_context>

<pallas_src>
import dataclasses
import functools
import itertools

import numpy as np
import jax
import jax.numpy as jnp
from jax.experimental import pallas as pl
from jax.experimental.pallas import tpu as pltpu


_EPS = 1e-12        # F.normalize default eps
_NEG_BIG = -1e30    # "minus infinity" for masked-out logits


@dataclasses.dataclass(frozen=True)
class Conf:
    use_global_loss: bool = True
    use_local_loss: bool = True
    tau: float = 0.1
    global_loss_alpha: float = 1.0
    local_loss_alpha: float = 1.0
    num_parts: int = 2          # the original code reads this off a global `cfg`
    sqrt_num_regions: int = 3
    region_size: int = 3
    matmul_dtype: str = "bfloat16"   # "bfloat16" (fast MXU path) or "float32"


def _round_up(x, m):
    return (x + m - 1) // m * m


def _chip_params():
    """Per-generation (row_block, img_block, vmem_limit_bytes)."""
    try:
        kind = jax.devices()[0].device_kind.lower()
    except Exception:
        kind = ""
    if "v5 lite" in kind or "v5e" in kind:
        # 4x128^2 MXU geometry; default scoped VMEM is only 16 MiB -> raise it.
        return 128, 16, 64 * 1024 * 1024
    if "v6" in kind or "trillium" in kind:
        # 128 MiB VMEM headroom: two 256-row MXU passes per grid step.
        return 512, 32, 96 * 1024 * 1024
    # v7x-safe default: 64 MiB physical / 32 MiB default scoped VMEM.
    return 256, 32, 32 * 1024 * 1024


# ----------------------------------------------------------------------------
# Shared in-kernel math
# ----------------------------------------------------------------------------
def _l2normalize(x):
    # F.normalize: x / max(||x||, eps) == x * rsqrt(max(||x||^2, eps^2))
    # (rsqrt on the clamped squared norm; tiny numeric difference vs division).
    n2 = jnp.sum(x * x, axis=-1, keepdims=True)
    return x * jax.lax.rsqrt(jnp.maximum(n2, _EPS * _EPS))


def _label0_ce(s, neg_mask, pos_logits):
    """Sum over `pos_logits` of label-0 cross-entropy rows.

    s          : (N, M) scaled logits.
    neg_mask   : (N, M) bool; True where column m is a negative for row n.
    pos_logits : list of (N, 1) scaled positive logits.

    Masked entries are pushed to -BIG *before* exponentiation so the exp
    underflows to exactly 0 (never produces inf); rows with no negatives give 0.
    """
    neg_logits = jnp.where(neg_mask, s, _NEG_BIG)
    m_neg = jnp.max(neg_logits, axis=-1, keepdims=True)
    sum_neg = jnp.sum(jnp.exp(neg_logits - m_neg), axis=-1, keepdims=True)
    total = jnp.zeros_like(m_neg)
    for l_pos in pos_logits:
        m = jnp.maximum(m_neg, l_pos)
        lse = m + jnp.log(jnp.exp(l_pos - m) + sum_neg * jnp.exp(m_neg - m))
        total = total + (lse - l_pos)
    return total


def _scalar_to_tile(x):
    """Place scalar x at [0, 0] of an (8, 128) tile (full, unmasked vst)."""
    sub = jax.lax.broadcasted_iota(jnp.int32, (8, 128), 0)
    lane = jax.lax.broadcasted_iota(jnp.int32, (8, 128), 1)
    return jnp.where((sub == 0) & (lane == 0), x, 0.0)


# ----------------------------------------------------------------------------
# GLOBAL loss kernel: one grid step = one block of query rows of Z (3B, C).
# Masks are generated from iota (no mask DMA); positives are direct row dots.
# ----------------------------------------------------------------------------
def _global_loss_kernel(zq_ref, zp1_ref, zp2_ref, zall_ref, out_ref, *,
                        inv_tau, batch, num_parts, n_rows, row_block):
    zq = zq_ref[...]                      # (TR, Cp) f32, already l2-normalized
    za = zall_ref[...]                    # (3B, Cp) matmul dtype, normalized
    # One MXU matmul yields every negative logit for this query block.
    s = jax.lax.dot_general(zq.astype(za.dtype), za, (((1,), (1,)), ((), ())),
                            preferred_element_type=jnp.float32) * inv_tau
    # Direct positive logits: O(TR*C) f32 rowsums instead of one-hot selects
    # over the full (TR, 3B) similarity matrix.
    l_pos1 = jnp.sum(zq * zp1_ref[...], axis=-1, keepdims=True) * inv_tau
    l_pos2 = jnp.sum(zq * zp2_ref[...], axis=-1, keepdims=True) * inv_tau
    # Negative mask from iota: columns whose partition residue differs.
    row = (pl.program_id(0) * row_block
           + jax.lax.broadcasted_iota(jnp.int32, (row_block, 1), 0))
    col = jax.lax.broadcasted_iota(jnp.int32, (1, n_rows), 1)
    neg = ((col % batch) % num_parts) != ((row % batch) % num_parts)
    ce = _label0_ce(s, neg, [l_pos1, l_pos2])                 # (TR, 1)
    valid = (row < n_rows).astype(jnp.float32)                # zero padded rows
    out_ref[...] = _scalar_to_tile(jnp.sum(ce * valid))


@functools.partial(jax.jit, static_argnames=("conf",))
def global_loss(proj, conf):
    """proj: (3B, C) 2-D feature matrix (the only layout global_loss supports)."""
    if proj.ndim != 2:
        raise ValueError("global_loss expects a 2-D (3B, C) projection")
    n_rows, feat = proj.shape
    batch = n_rows // 3
    mm_dtype = jnp.bfloat16 if conf.matmul_dtype == "bfloat16" else jnp.float32

    # Hoisted: normalize every row ONCE (the kernel previously re-normalized the
    # resident (3B, C) matrix on every grid step).  Zero-pad C to a lane multiple;
    # zeros change neither norms nor dot products.
    zn = _l2normalize(proj.astype(jnp.float32))
    feat_pad = _round_up(feat, 128)
    if feat_pad != feat:
        zn = jnp.pad(zn, ((0, 0), (0, feat_pad - feat)))

    # Positive rows are a static permutation: same raw index in the other views.
    ridx = np.arange(n_rows)
    raw, view = ridx % batch, ridx // batch
    zp1 = zn[jnp.asarray(raw + batch * ((view + 1) % 3), np.int32)]
    zp2 = zn[jnp.asarray(raw + batch * ((view + 2) % 3), np.int32)]

    chip_rb, _, vmem_limit = _chip_params()
    # Small inputs get 8-row blocks (exercises the multi-block parallel path);
    # realistic sizes use the per-chip MXU-friendly block.  NOTE: the last block
    # can be mostly padding when n_rows is not a multiple of row_block.
    row_block = 8 if n_rows <= 32 else min(chip_rb, _round_up(n_rows, 8))
    padded = _round_up(n_rows, row_block)
    pad = padded - n_rows
    zq = jnp.pad(zn, ((0, pad), (0, 0)))
    zp1 = jnp.pad(zp1, ((0, pad), (0, 0)))
    zp2 = jnp.pad(zp2, ((0, pad), (0, 0)))
    nblocks = padded // row_block

    kernel = functools.partial(
        _global_loss_kernel, inv_tau=1.0 / float(conf.tau), batch=batch,
        num_parts=conf.num_parts, n_rows=n_rows, row_block=row_block)
    out = pl.pallas_call(
        kernel,
        out_shape=jax.ShapeDtypeStruct((nblocks, 8, 128), jnp.float32),
        grid_spec=pltpu.PrefetchScalarGridSpec(
            num_scalar_prefetch=0,
            grid=(nblocks,),
            in_specs=[
                pl.BlockSpec((row_block, feat_pad), lambda i: (i, 0)),  # queries
                pl.BlockSpec((row_block, feat_pad), lambda i: (i, 0)),  # positives #1
                pl.BlockSpec((row_block, feat_pad), lambda i: (i, 0)),  # positives #2
                # Constant block index -> fetched once, stays VMEM-resident.
                pl.BlockSpec((n_rows, feat_pad), lambda i: (0, 0)),
            ],
            out_specs=pl.BlockSpec((None, 8, 128), lambda i: (i, 0, 0)),
        ),
        compiler_params=pltpu.CompilerParams(
            dimension_semantics=("parallel",),
            vmem_limit_bytes=vmem_limit),
    )(zq, zp1, zp2, zn.astype(mm_dtype))
    return jnp.sum(out) / 2.0 / batch


# ----------------------------------------------------------------------------
# LOCAL loss: vectorized region extraction (host) + lane-dense fused kernel.
# ----------------------------------------------------------------------------
def _region_index_arrays(size_last, conf):
    step = size_last // (conf.sqrt_num_regions + 1)
    centres = list(range(0, size_last + 1, step))[1:-1]
    gap = (conf.region_size - 1) // 2
    hx, wy = [], []
    for cx, cy in itertools.product(centres, centres):
        if gap != 0:
            # range(c-gap, c+gap) (a 2*gap window) matches the PyTorch indexing.
            hx.append(list(range(cx - gap, cx + gap)))
            wy.append(list(range(cy - gap, cy + gap)))
        else:
            hx.append([cx])
            wy.append([cy])
    return np.asarray(hx, np.int32), np.asarray(wy, np.int32)


def _extract_regions(feats, conf):
    """feats: (Bv, C, H, W) -> (Bv, R^2, C*win*win) unnormalized regions in the
    same (C, x, y) flatten order as PyTorch's _sample_region (one vectorized
    gather; normalization happens inside the kernel)."""
    hx, wy = _region_index_arrays(feats.shape[-1], conf)
    reg = feats[:, :, hx[:, :, None], wy[:, None, :]]   # (Bv, C, R^2, win, win)
    reg = jnp.transpose(reg, (0, 2, 1, 3, 4))           # (Bv, R^2, C, win, win)
    return reg.reshape(reg.shape[0], reg.shape[1], -1)


def _local_loss_kernel(zr_ref, zp_ref, out_ref, *, inv_tau, batch, num_regions,
                       nreg2, block_rows, mm_dtype):
    zr = _l2normalize(zr_ref[...].astype(jnp.float32))   # (TN, Fp) region rows
    zp = _l2normalize(zp_ref[...].astype(jnp.float32))   # partner-view rows
    # Direct positive logits (same region, other view), f32 rowsum.
    l_pos = jnp.sum(zr * zp, axis=-1, keepdims=True) * inv_tau
    # Lane-dense similarity of every region row of the block against every other;
    # the iota mask keeps only the "same image, different region" columns.
    zmm = zr.astype(mm_dtype)
    s = jax.lax.dot_general(zmm, zmm, (((1,), (1,)), ((), ())),
                            preferred_element_type=jnp.float32) * inv_tau
    rr = jax.lax.broadcasted_iota(jnp.int32, (block_rows, 1), 0)
    cc = jax.lax.broadcasted_iota(jnp.int32, (1, block_rows), 1)
    same_img = (rr // nreg2) == (cc // nreg2)
    diff_reg = ((rr % nreg2) % num_regions) != ((cc % nreg2) % num_regions)
    ce = _label0_ce(s, same_img & diff_reg, [l_pos])      # (TN, 1)
    gr = pl.program_id(0) * block_rows + rr               # global flat row index
    valid = (gr < batch * nreg2).astype(jnp.float32)      # zero padded images
    out_ref[...] = _scalar_to_tile(jnp.sum(ce * valid))


@functools.partial(jax.jit, static_argnames=("conf",))
def local_loss(proj, conf):
    """proj: (3B, C, H, W) NCHW features."""
    if proj.ndim != 4:
        raise ValueError("local_loss expects a 4-D (3B, C, H, W) projection")
    batch = proj.shape[0] // 3
    mm_dtype = jnp.bfloat16 if conf.matmul_dtype == "bfloat16" else jnp.float32
    num_regions = conf.sqrt_num_regions ** 2
    nreg2 = 2 * num_regions

    r1 = _extract_regions(proj[batch:2 * batch], conf)    # (B, R^2, F) aug1
    r2 = _extract_regions(proj[2 * batch:], conf)         # (B, R^2, F) aug2
    zr = jnp.concatenate([r1, r2], axis=1)                # (B, 2R^2, F) queries
    zpos = jnp.concatenate([r2, r1], axis=1)              # partner-view rows
    feat = zr.shape[-1]

    _, chip_ib, vmem_limit = _chip_params()
    img_block = min(_round_up(batch, 8), chip_ib)
    padded_b = _round_up(batch, img_block)
    if padded_b != batch:
        zr = jnp.pad(zr, ((0, padded_b - batch), (0, 0), (0, 0)))
        zpos = jnp.pad(zpos, ((0, padded_b - batch), (0, 0), (0, 0)))

    # Flatten to lane-dense 2-D operands; pad F to a multiple of 128 (zeros
    # change neither norms nor dot products).
    feat_pad = _round_up(feat, 128)
    zr = zr.reshape(padded_b * nreg2, feat)
    zpos = zpos.reshape(padded_b * nreg2, feat)
    if feat_pad != feat:
        zr = jnp.pad(zr, ((0, 0), (0, feat_pad - feat)))
        zpos = jnp.pad(zpos, ((0, 0), (0, feat_pad - feat)))

    block_rows = img_block * nreg2
    nblocks = padded_b // img_block
    kernel = functools.partial(
        _local_loss_kernel, inv_tau=1.0 / float(conf.tau), batch=batch,
        num_regions=num_regions, nreg2=nreg2, block_rows=block_rows,
        mm_dtype=mm_dtype)
    out = pl.pallas_call(
        kernel,
        out_shape=jax.ShapeDtypeStruct((nblocks, 8, 128), jnp.float32),
        grid_spec=pltpu.PrefetchScalarGridSpec(
            num_scalar_prefetch=0,
            grid=(nblocks,),
            in_specs=[
                pl.BlockSpec((block_rows, feat_pad), lambda i: (i, 0)),
                pl.BlockSpec((block_rows, feat_pad), lambda i: (i, 0)),
            ],
            out_specs=pl.BlockSpec((None, 8, 128), lambda i: (i, 0, 0)),
        ),
        compiler_params=pltpu.CompilerParams(
            dimension_semantics=("parallel",),
            vmem_limit_bytes=vmem_limit),
    )(zr, zpos)
    return jnp.sum(out) / 2.0 / num_regions / batch


# ----------------------------------------------------------------------------
# Module-equivalent forward.
# ----------------------------------------------------------------------------
def cgl_contrastive_loss_forward(preds, conf):
    proj = preds['proj']
    losses = {}
    if conf.use_global_loss:
        losses['G'] = global_loss(proj, conf=conf) * conf.global_loss_alpha
    if conf.use_local_loss:
        losses['L'] = local_loss(proj, conf=conf) * conf.local_loss_alpha
    return losses


# ----------------------------------------------------------------------------
# Pure-JAX reference (faithful per-call enumeration, used only to verify).
# ----------------------------------------------------------------------------
def _nce_ref(q, k, neg, tau):
    def l2n(x):
        return x / jnp.maximum(jnp.linalg.norm(x, axis=-1, keepdims=True), _EPS)
    qn, kn, gn = l2n(q), l2n(k), l2n(neg)
    l_pos = jnp.sum(qn * kn, axis=-1, keepdims=True)
    l_neg = jnp.einsum('nc,kc->nk', qn, gn, precision=jax.lax.Precision.HIGHEST)
    logits = jnp.concatenate([l_pos, l_neg], axis=1) / tau
    lse = jax.scipy.special.logsumexp(logits, axis=1)
    return jnp.mean(lse - logits[:, 0])


def _global_loss_ref(proj, conf):
    batch = proj.shape[0] // 3
    rawx, aug1, aug2 = proj[:batch], proj[batch:2 * batch], proj[2 * batch:]
    total = jnp.float32(0.0)
    for idx in range(batch):
        pos = list(range(idx % conf.num_parts, batch, conf.num_parts))
        neg = [i for i in range(batch) if i not in pos]
        p = jnp.asarray(pos, jnp.int32)
        m = jnp.asarray(neg, jnp.int32)
        zpos = [rawx[p], aug1[p], aug2[p]]
        zneg = jnp.concatenate([rawx[m], aug1[m], aug2[m]], axis=0)
        for a, b in itertools.combinations(zpos, 2):
            total = total + _nce_ref(a, b, zneg, conf.tau)
            total = total + _nce_ref(b, a, zneg, conf.tau)
    return total / 2.0 / batch


def _local_loss_ref(proj, conf):
    batch = proj.shape[0] // 3
    aug1, aug2 = proj[batch:2 * batch], proj[2 * batch:]
    num_regions = conf.sqrt_num_regions ** 2
    r1 = _extract_regions(aug1, conf)
    r2 = _extract_regions(aug2, conf)
    total = jnp.float32(0.0)
    for b in range(batch):
        for rdx in range(num_regions):
            nidx = jnp.asarray([r for r in range(num_regions) if r != rdx], jnp.int32)
            neg = jnp.concatenate([r1[b][nidx], r2[b][nidx]], axis=0)
            a = r1[b, rdx:rdx + 1]
            c = r2[b, rdx:rdx + 1]
            total = total + _nce_ref(a, c, neg, conf.tau)
            total = total + _nce_ref(c, a, neg, conf.tau)
    return total / 2.0 / num_regions / batch


if __name__ == "__main__":
    key = jax.random.PRNGKey(0)
    kg, kl = jax.random.split(key)

    # The original PyTorch module only works with a 2-D `proj` for the global
    # loss and a 4-D NCHW `proj` for the local loss, so each loss gets its own
    # consistent input.
    B_g, C_g = 4, 32
    proj_global = jax.random.normal(kg, (3 * B_g, C_g), dtype=jnp.float32)

    B_l, C_l, H, W = 2, 4, 16, 16
    proj_local = jax.random.normal(kl, (3 * B_l, C_l, H, W), dtype=jnp.float32)

    conf_g = Conf(use_global_loss=True, use_local_loss=False)          # bf16 MXU path
    conf_l = Conf(use_global_loss=False, use_local_loss=True)

    out_g = cgl_contrastive_loss_forward({'proj': proj_global}, conf_g)
    out_l = cgl_contrastive_loss_forward({'proj': proj_local}, conf_l)
    jax.block_until_ready((out_g, out_l))

    # f32-MXU configs for tight numerical parity with the reference.
    conf_g32 = dataclasses.replace(conf_g, matmul_dtype="float32")
    conf_l32 = dataclasses.replace(conf_l, matmul_dtype="float32")
    out_g32 = cgl_contrastive_loss_forward({'proj': proj_global}, conf_g32)
    out_l32 = cgl_contrastive_loss_forward({'proj': proj_local}, conf_l32)
    jax.block_until_ready((out_g32, out_l32))

    ref_g = _global_loss_ref(proj_global, conf_g) * conf_g.global_loss_alpha
    ref_l = _local_loss_ref(proj_local, conf_l) * conf_l.local_loss_alpha

    def _close(a, b, tol):
        return bool(jnp.abs(a - b) <= tol + tol * jnp.abs(b))

    assert _close(out_g32['G'], ref_g, 2e-3), (float(out_g32['G']), float(ref_g))
    assert _close(out_l32['L'], ref_l, 2e-3), (float(out_l32['L']), float(ref_l))
    assert _close(out_g['G'], ref_g, 8e-2), (float(out_g['G']), float(ref_g))
    assert _close(out_l['L'], ref_l, 8e-2), (float(out_l['L']), float(ref_l))

    print("KERNEL_OK")
</pallas_src>

<mosaic_0001>
module attributes {stable_mosaic.version = 11 : i64} {
  func.func @_global_loss_kernel(%arg0: i32, %arg1: memref<8x128xf32, #tpu.memory_space<vmem>>, %arg2: memref<8x128xf32, #tpu.memory_space<vmem>>, %arg3: memref<8x128xf32, #tpu.memory_space<vmem>>, %arg4: memref<12x128xbf16, #tpu.memory_space<vmem>>, %arg5: memref<1x8x128xf32, #tpu.memory_space<vmem>>) attributes {dimension_semantics = [#tpu.dimension_semantics<parallel>], iteration_bounds = array<i64: 2>, scalar_prefetch = 0 : i64, scratch_operands = 0 : i64, tpu.core_type = #tpu.core_type<tc>, window_params = [{transform_indices = @transform_0, window_bounds = array<i64: 8, 128>}, {transform_indices = @transform_1, window_bounds = array<i64: 8, 128>}, {transform_indices = @transform_2, window_bounds = array<i64: 8, 128>}, {pipeline_mode = #tpu.pipeline_mode<synchronous>, transform_indices = @transform_3, window_bounds = array<i64: 12, 128>}, {transform_indices = @transform_4, window_bounds = array<i64: 1, 8, 128>}]} {
    %c0 = arith.constant 0 : index
    %c0_0 = arith.constant 0 : index
    %0 = vector.load %arg1[%c0, %c0_0] : memref<8x128xf32, #tpu.memory_space<vmem>>, vector<8x128xf32>
    %c0_1 = arith.constant 0 : index
    %c0_2 = arith.constant 0 : index
    %1 = vector.load %arg4[%c0_1, %c0_2] : memref<12x128xbf16, #tpu.memory_space<vmem>>, vector<12x128xbf16>
    %2 = arith.truncf %0 : vector<8x128xf32> to vector<8x128xbf16>
    %cst = arith.constant dense<0.000000e+00> : vector<8x12xf32>
    %3 = tpu.matmul %2, %1, %cst {dimension_numbers = #tpu.dot_dimension_numbers<[1], [1], [0], [0], [0, 0, 1, 0], [], []>} : vector<8x128xbf16>, vector<12x128xbf16>, vector<8x12xf32> -> vector<8x12xf32>
    %cst_3 = arith.constant 1.000000e+01 : f32
    %4 = vector.broadcast %cst_3 : f32 to vector<8x12xf32>
    %5 = arith.mulf %3, %4 : vector<8x12xf32>
    %c0_4 = arith.constant 0 : index
    %c0_5 = arith.constant 0 : index
    %6 = vector.load %arg2[%c0_4, %c0_5] : memref<8x128xf32, #tpu.memory_space<vmem>>, vector<8x128xf32>
    %7 = arith.mulf %0, %6 : vector<8x128xf32>
    %cst_6 = arith.constant dense<0.000000e+00> : vector<8xf32>
    %8 = vector.multi_reduction <add>, %7, %cst_6 [1] : vector<8x128xf32> to vector<8xf32>
    %9 = vector.shape_cast %8 : vector<8xf32> to vector<8x1xf32>
    %cst_7 = arith.constant 1.000000e+01 : f32
    %10 = vector.broadcast %cst_7 : f32 to vector<8x1xf32>
    %11 = arith.mulf %9, %10 : vector<8x1xf32>
    %c0_8 = arith.constant 0 : index
    %c0_9 = arith.constant 0 : index
    %12 = vector.load %arg3[%c0_8, %c0_9] : memref<8x128xf32, #tpu.memory_space<vmem>>, vector<8x128xf32>
    %13 = arith.mulf %0, %12 : vector<8x128xf32>
    %cst_10 = arith.constant dense<0.000000e+00> : vector<8xf32>
    %14 = vector.multi_reduction <add>, %13, %cst_10 [1] : vector<8x128xf32> to vector<8xf32>
    %15 = vector.shape_cast %14 : vector<8xf32> to vector<8x1xf32>
    %cst_11 = arith.constant 1.000000e+01 : f32
    %16 = vector.broadcast %cst_11 : f32 to vector<8x1xf32>
    %17 = arith.mulf %15, %16 : vector<8x1xf32>
    %c8_i32 = arith.constant 8 : i32
    %18 = arith.muli %arg0, %c8_i32 : i32
    %19 = tpu.iota {dimensions = array<i32: 0>} : vector<8x1xi32>
    %20 = vector.broadcast %18 : i32 to vector<8x1xi32>
    %21 = arith.addi %20, %19 : vector<8x1xi32>
    %22 = tpu.iota {dimensions = array<i32: 1>} : vector<1x12xi32>
    %c4_i32 = arith.constant 4 : i32
    %c0_i32 = arith.constant 0 : i32
    %23 = arith.cmpi eq, %c4_i32, %c0_i32 : i32
    %c1_i32 = arith.constant 1 : i32
    %24 = arith.select %23, %c1_i32, %c4_i32 : i32
    %25 = vector.broadcast %24 : i32 to vector<1x12xi32>
    %26 = arith.remsi %22, %25 : vector<1x12xi32>
    %c0_i32_12 = arith.constant 0 : i32
    %27 = vector.broadcast %c0_i32_12 : i32 to vector<1x12xi32>
    %28 = arith.cmpi ne, %26, %27 : vector<1x12xi32>
    %c0_i32_13 = arith.constant 0 : i32
    %29 = vector.broadcast %c0_i32_13 : i32 to vector<1x12xi32>
    %30 = arith.cmpi slt, %26, %29 : vector<1x12xi32>
    %c0_i32_14 = arith.constant 0 : i32
    %31 = arith.cmpi slt, %24, %c0_i32_14 : i32
    %32 = vector.broadcast %31 : i1 to vector<1x12xi1>
    %33 = vector.broadcast %32 : vector<1x12xi1> to vector<1x12xi1>
    %34 = arith.xori %30, %33 : vector<1x12xi1>
    %35 = arith.andi %34, %28 : vector<1x12xi1>
    %36 = vector.broadcast %24 : i32 to vector<1x12xi32>
    %37 = arith.addi %26, %36 : vector<1x12xi32>
    %38 = arith.select %35, %37, %26 : vector<1x12xi1>, vector<1x12xi32>
    %c2_i32 = arith.constant 2 : i32
    %c0_i32_15 = arith.constant 0 : i32
    %39 = arith.cmpi eq, %c2_i32, %c0_i32_15 : i32
    %c1_i32_16 = arith.constant 1 : i32
    %40 = arith.select %39, %c1_i32_16, %c2_i32 : i32
    %41 = vector.broadcast %40 : i32 to vector<1x12xi32>
    %42 = arith.remsi %38, %41 : vector<1x12xi32>
    %c0_i32_17 = arith.constant 0 : i32
    %43 = vector.broadcast %c0_i32_17 : i32 to vector<1x12xi32>
    %44 = arith.cmpi ne, %42, %43 : vector<1x12xi32>
    %c0_i32_18 = arith.constant 0 : i32
    %45 = vector.broadcast %c0_i32_18 : i32 to vector<1x12xi32>
    %46 = arith.cmpi slt, %42, %45 : vector<1x12xi32>
    %c0_i32_19 = arith.constant 0 : i32
    %47 = arith.cmpi slt, %40, %c0_i32_19 : i32
    %48 = vector.broadcast %47 : i1 to vector<1x12xi1>
    %49 = vector.broadcast %48 : vector<1x12xi1> to vector<1x12xi1>
    %50 = arith.xori %46, %49 : vector<1x12xi1>
    %51 = arith.andi %50, %44 : vector<1x12xi1>
    %52 = vector.broadcast %40 : i32 to vector<1x12xi32>
    %53 = arith.addi %42, %52 : vector<1x12xi32>
    %54 = arith.select %51, %53, %42 : vector<1x12xi1>, vector<1x12xi32>
    %c4_i32_20 = arith.constant 4 : i32
    %c0_i32_21 = arith.constant 0 : i32
    %55 = arith.cmpi eq, %c4_i32_20, %c0_i32_21 : i32
    %c1_i32_22 = arith.constant 1 : i32
    %56 = arith.select %55, %c1_i32_22, %c4_i32_20 : i32
    %57 = vector.broadcast %56 : i32 to vector<8x1xi32>
    %58 = arith.remsi %21, %57 : vector<8x1xi32>
    %c0_i32_23 = arith.constant 0 : i32
    %59 = vector.broadcast %c0_i32_23 : i32 to vector<8x1xi32>
    %60 = arith.cmpi ne, %58, %59 : vector<8x1xi32>
    %c0_i32_24 = arith.constant 0 : i32
    %61 = vector.broadcast %c0_i32_24 : i32 to vector<8x1xi32>
    %62 = arith.cmpi slt, %58, %61 : vector<8x1xi32>
    %c0_i32_25 = arith.constant 0 : i32
    %63 = arith.cmpi slt, %56, %c0_i32_25 : i32
    %64 = vector.broadcast %63 : i1 to vector<8x1xi1>
    %65 = vector.broadcast %64 : vector<8x1xi1> to vector<8x1xi1>
    %66 = arith.xori %62, %65 : vector<8x1xi1>
    %67 = arith.andi %66, %60 : vector<8x1xi1>
    %68 = vector.broadcast %56 : i32 to vector<8x1xi32>
    %69 = arith.addi %58, %68 : vector<8x1xi32>
    %70 = arith.select %67, %69, %58 : vector<8x1xi1>, vector<8x1xi32>
    %c2_i32_26 = arith.constant 2 : i32
    %c0_i32_27 = arith.constant 0 : i32
    %71 = arith.cmpi eq, %c2_i32_26, %c0_i32_27 : i32
    %c1_i32_28 = arith.constant 1 : i32
    %72 = arith.select %71, %c1_i32_28, %c2_i32_26 : i32
    %73 = vector.broadcast %72 : i32 to vector<8x1xi32>
    %74 = arith.remsi %70, %73 : vector<8x1xi32>
    %c0_i32_29 = arith.constant 0 : i32
    %75 = vector.broadcast %c0_i32_29 : i32 to vector<8x1xi32>
    %76 = arith.cmpi ne, %74, %75 : vector<8x1xi32>
    %c0_i32_30 = arith.constant 0 : i32
    %77 = vector.broadcast %c0_i32_30 : i32 to vector<8x1xi32>
    %78 = arith.cmpi slt, %74, %77 : vector<8x1xi32>
    %c0_i32_31 = arith.constant 0 : i32
    %79 = arith.cmpi slt, %72, %c0_i32_31 : i32
    %80 = vector.broadcast %79 : i1 to vector<8x1xi1>
    %81 = vector.broadcast %80 : vector<8x1xi1> to vector<8x1xi1>
    %82 = arith.xori %78, %81 : vector<8x1xi1>
    %83 = arith.andi %82, %76 : vector<8x1xi1>
    %84 = vector.broadcast %72 : i32 to vector<8x1xi32>
    %85 = arith.addi %74, %84 : vector<8x1xi32>
    %86 = arith.select %83, %85, %74 : vector<8x1xi1>, vector<8x1xi32>
    %87 = vector.broadcast %54 : vector<1x12xi32> to vector<8x12xi32>
    %88 = vector.broadcast %86 : vector<8x1xi32> to vector<8x12xi32>
    %89 = arith.cmpi ne, %87, %88 : vector<8x12xi32>
    %cst_32 = arith.constant -1.000000e+30 : f32
    %90 = vector.broadcast %cst_32 : f32 to vector<8x12xf32>
    %91 = arith.select %89, %5, %90 : vector<8x12xi1>, vector<8x12xf32>
    %cst_33 = arith.constant dense<0xFF800000> : vector<8xf32>
    %92 = vector.multi_reduction <maximumf>, %91, %cst_33 [1] : vector<8x12xf32> to vector<8xf32>
    %93 = vector.shape_cast %92 : vector<8xf32> to vector<8x1xf32>
    %94 = vector.broadcast %93 : vector<8x1xf32> to vector<8x12xf32>
    %95 = arith.subf %91, %94 : vector<8x12xf32>
    %96 = math.exp %95 : vector<8x12xf32>
    %cst_34 = arith.constant dense<0.000000e+00> : vector<8xf32>
    %97 = vector.multi_reduction <add>, %96, %cst_34 [1] : vector<8x12xf32> to vector<8xf32>
    %98 = vector.shape_cast %97 : vector<8xf32> to vector<8x1xf32>
    %cst_35 = arith.constant 0.000000e+00 : f32
    %99 = vector.broadcast %cst_35 : f32 to vector<8x1xf32>
    %100 = arith.maximumf %93, %11 : vector<8x1xf32>
    %101 = arith.subf %11, %100 : vector<8x1xf32>
    %102 = math.exp %101 : vector<8x1xf32>
    %103 = arith.subf %93, %100 : vector<8x1xf32>
    %104 = math.exp %103 : vector<8x1xf32>
    %105 = arith.mulf %98, %104 : vector<8x1xf32>
    %106 = arith.addf %102, %105 : vector<8x1xf32>
    %107 = math.log %106 : vector<8x1xf32>
    %108 = arith.addf %100, %107 : vector<8x1xf32>
    %109 = arith.subf %108, %11 : vector<8x1xf32>
    %110 = arith.addf %99, %109 : vector<8x1xf32>
    %111 = arith.maximumf %93, %17 : vector<8x1xf32>
    %112 = arith.subf %17, %111 : vector<8x1xf32>
    %113 = math.exp %112 : vector<8x1xf32>
    %114 = arith.subf %93, %111 : vector<8x1xf32>
    %115 = math.exp %114 : vector<8x1xf32>
    %116 = arith.mulf %98, %115 : vector<8x1xf32>
    %117 = arith.addf %113, %116 : vector<8x1xf32>
    %118 = math.log %117 : vector<8x1xf32>
    %119 = arith.addf %111, %118 : vector<8x1xf32>
    %120 = arith.subf %119, %17 : vector<8x1xf32>
    %121 = arith.addf %110, %120 : vector<8x1xf32>
    %c12_i32 = arith.constant 12 : i32
    %122 = vector.broadcast %c12_i32 : i32 to vector<8x1xi32>
    %123 = arith.cmpi slt, %21, %122 : vector<8x1xi32>
    %124 = arith.extui %123 : vector<8x1xi1> to vector<8x1xi32>
    %125 = arith.sitofp %124 : vector<8x1xi32> to vector<8x1xf32>
    %126 = arith.mulf %121, %125 : vector<8x1xf32>
    %127 = vector.shape_cast %126 : vector<8x1xf32> to vector<1x8x1xf32>
    %cst_36 = arith.constant dense<0.000000e+00> : vector<1xf32>
    %128 = vector.multi_reduction <add>, %127, %cst_36 [1, 2] : vector<1x8x1xf32> to vector<1xf32>
    %129 = vector.shape_cast %128 : vector<1xf32> to vector<1x1x1xf32>
    %130 = vector.extract %129[0, 0, 0] : f32 from vector<1x1x1xf32>
    %131 = tpu.iota {dimensions = array<i32: 0>} : vector<8x128xi32>
    %132 = tpu.iota {dimensions = array<i32: 1>} : vector<8x128xi32>
    %c0_i32_37 = arith.constant 0 : i32
    %133 = vector.broadcast %c0_i32_37 : i32 to vector<8x128xi32>
    %134 = arith.cmpi eq, %131, %133 : vector<8x128xi32>
    %c0_i32_38 = arith.constant 0 : i32
    %135 = vector.broadcast %c0_i32_38 : i32 to vector<8x128xi32>
    %136 = arith.cmpi eq, %132, %135 : vector<8x128xi32>
    %137 = arith.andi %134, %136 : vector<8x128xi1>
    %cst_39 = arith.constant 0.000000e+00 : f32
    %138 = vector.broadcast %130 : f32 to vector<8x128xf32>
    %139 = vector.broadcast %cst_39 : f32 to vector<8x128xf32>
    %140 = arith.select %137, %138, %139 : vector<8x128xi1>, vector<8x128xf32>
    %c0_40 = arith.constant 0 : index
    %c0_41 = arith.constant 0 : index
    %c0_42 = arith.constant 0 : index
    %141 = vector.load %arg5[%c0_40, %c0_41, %c0_42] : memref<1x8x128xf32, #tpu.memory_space<vmem>>, vector<1x8x128xf32>
    %142 = vector.shape_cast %141 : vector<1x8x128xf32> to vector<8x128xf32>
    %143 = vector.shape_cast %140 : vector<8x128xf32> to vector<1x8x128xf32>
    tpu.vector_store %arg5[%c0_40, %c0_41, %c0_42], %143 {strides = array<i32>} : memref<1x8x128xf32, #tpu.memory_space<vmem>>, vector<1x8x128xf32>,
    return
  }
  func.func @transform_0(%arg0: i32) -> (i32, i32) {
    %c0_i32 = arith.constant 0 : i32
    %c0_i32_0 = arith.constant 0 : i32
    return %arg0, %c0_i32 : i32, i32
  }
  func.func @transform_1(%arg0: i32) -> (i32, i32) {
    %c0_i32 = arith.constant 0 : i32
    %c0_i32_0 = arith.constant 0 : i32
    return %arg0, %c0_i32 : i32, i32
  }
  func.func @transform_2(%arg0: i32) -> (i32, i32) {
    %c0_i32 = arith.constant 0 : i32
    %c0_i32_0 = arith.constant 0 : i32
    return %arg0, %c0_i32 : i32, i32
  }
  func.func @transform_3(%arg0: i32) -> (i32, i32) {
    %c0_i32 = arith.constant 0 : i32
    %c0_i32_0 = arith.constant 0 : i32
    %c0_i32_1 = arith.constant 0 : i32
    return %c0_i32, %c0_i32_0 : i32, i32
  }
  func.func @transform_4(%arg0: i32) -> (i32, i32, i32) {
    %c0_i32 = arith.constant 0 : i32
    %c0_i32_0 = arith.constant 0 : i32
    %c0_i32_1 = arith.constant 0 : i32
    return %arg0, %c0_i32, %c0_i32_0 : i32, i32, i32
  }
}

</mosaic_0001>

<llo_original>
// kernel: global_loss.1
$region0: #{global_loss.1}
  #allocation0 [shape = 'u32[]', space=smem, size = 0x4, offset = 0x4, fixed_abs, tag = 'smem constant byte address 0x4 - core index']
  #allocation1 [shape = 'u32[144,128]{1,0:T(1,128)}', space=vmem, size = 0x12000, scoped, tag = 'internal scratch']
  %s0 = inlined_call_operand.vmem [shape: f32[16,128], index: 0, kind: input, shape index: {}]
  %s1 = inlined_call_operand.vmem [shape: f32[16,128], index: 1, kind: input, shape index: {}]
  %s2 = inlined_call_operand.vmem [shape: f32[16,128], index: 2, kind: input, shape index: {}]
  %s3 = inlined_call_operand.vmem [shape: bf16[12,128], index: 3, kind: input, shape index: {}]
  %s4 = inlined_call_operand.vmem [shape: f32[2,8,128], index: 4, kind: output, shape index: {}]
  %s5 = sld [smem:[#allocation0]]
  $region49: #{global_loss.1} parent=0
    _
  %s7 = ssub.s32 1, %s5
  %s8 = scalar_select 0, %s7, %s5
  loop: start=0, step=1, limit=4
  $region2: #{global_loss.1} parent=0 // loop_pre_header
    _
  $region3: #{global_loss.1} parent=0 // loop_header
    %s10 = sphi 0, %s14
    %p11 = scmp.ge.s32.totalorder %s10, 4
    %s20 = sphi 0, %s22
    %s23 = sphi 0, %s20
    %s24 = sphi 0, %s23
    %s40 = sphi 0, %s24
    %s46 = sphi 0, %s48
    %s49 = sphi 0, %s46
    %s50 = sphi 0, %s49
    %s66 = sphi 0, %s50
    %s72 = sphi 0, %s74
    %s75 = sphi 0, %s72
    %s76 = sphi 0, %s75
    %s92 = sphi 0, %s76
    %s96 = sphi 0, %s96
    %s98 = sphi 0, %s96
    %s99 = sphi 0, %s98
    %s113 = sphi 0, %s99
    %s119 = sphi 0, %s121
    %s122 = sphi 0, %s119
    %s123 = sphi 0, %s122
    %s139 = sphi 0, %s123
  $region4: #{global_loss.1} parent=0 // loop_header_branch
    %13 = sbr.rel (%p11) target = $region8
  $region5: #{global_loss.1} parent=0 // loop_body
    %s15 = ssub.s32 %s10, 1
    %s16 = ssub.s32 %s10, 2
    %s17 = sadd.s32 %s10, 1
    %s18 = ssub.s32 %s10, %s17
    %p19 = scmp.eq.s32.totalorder %s18, 0
    %s21 = sadd.s32 %s20, 1
    %s22 = scalar_select %p19, %s20, %s21
    %p25 = pneg %p19
    %p26 = scmp.eq.s32.totalorder %s10, 1
    %p27 = por %p25, %p26
    %p28 = scmp.ne.s32.totalorder %s20, %s23
    %p29 = scmp.eq.s32.totalorder %s10, 0
    %p30 = por %p28, %p29
    %p31 = scmp.ne.s32.totalorder %s20, %s23
    %p32 = scmp.eq.s32.totalorder %s15, 1
    %p33 = por %p31, %p32
    %p34 = scmp.ne.s32.totalorder %s23, %s24
    %p35 = scmp.eq.s32.totalorder %s15, 0
    %p36 = por %p34, %p35
    %p37 = scmp.ne.s32.totalorder %s23, %s24
    %p38 = scmp.eq.s32.totalorder %s16, 1
    %p39 = por %p37, %p38
    %p41 = scmp.ne.s32.totalorder %s24, %s40
    %p42 = scmp.eq.s32.totalorder %s16, 0
    %p43 = por %p41, %p42
    %s44 = ssub.s32 %s10, %s17
    %p45 = scmp.eq.s32.totalorder %s44, 0
    %s47 = sadd.s32 %s46, 1
    %s48 = scalar_select %p45, %s46, %s47
    %p51 = pneg %p45
    %p52 = scmp.eq.s32.totalorder %s10, 1
    %p53 = por %p51, %p52
    %p54 = scmp.ne.s32.totalorder %s46, %s49
    %p55 = scmp.eq.s32.totalorder %s10, 0
    %p56 = por %p54, %p55
    %p57 = scmp.ne.s32.totalorder %s46, %s49
    %p58 = scmp.eq.s32.totalorder %s15, 1
    %p59 = por %p57, %p58
    %p60 = scmp.ne.s32.totalorder %s49, %s50
    %p61 = scmp.eq.s32.totalorder %s15, 0
    %p62 = por %p60, %p61
    %p63 = scmp.ne.s32.totalorder %s49, %s50
    %p64 = scmp.eq.s32.totalorder %s16, 1
    %p65 = por %p63, %p64
    %p67 = scmp.ne.s32.totalorder %s50, %s66
    %p68 = scmp.eq.s32.totalorder %s16, 0
    %p69 = por %p67, %p68
    %s70 = ssub.s32 %s10, %s17
    %p71 = scmp.eq.s32.totalorder %s70, 0
    %s73 = sadd.s32 %s72, 1
    %s74 = scalar_select %p71, %s72, %s73
    %p77 = pneg %p71
    %p78 = scmp.eq.s32.totalorder %s10, 1
    %p79 = por %p77, %p78
    %p80 = scmp.ne.s32.totalorder %s72, %s75
    %p81 = scmp.eq.s32.totalorder %s10, 0
    %p82 = por %p80, %p81
    %p83 = scmp.ne.s32.totalorder %s72, %s75
    %p84 = scmp.eq.s32.totalorder %s15, 1
    %p85 = por %p83, %p84
    %p86 = scmp.ne.s32.totalorder %s75, %s76
    %p87 = scmp.eq.s32.totalorder %s15, 0
    %p88 = por %p86, %p87
    %p89 = scmp.ne.s32.totalorder %s75, %s76
    %p90 = scmp.eq.s32.totalorder %s16, 1
    %p91 = por %p89, %p90
    %p93 = scmp.ne.s32.totalorder %s76, %s92
    %p94 = scmp.eq.s32.totalorder %s16, 0
    %p95 = por %p93, %p94
    %s97 = sadd.s32 %s96, 1
    %p100 = scmp.eq.s32.totalorder %s10, 1
    %p101 = scmp.ne.s32.totalorder %s96, %s98
    %p102 = scmp.eq.s32.totalorder %s10, 0
    %p103 = por %p101, %p102
    %p104 = scmp.ne.s32.totalorder %s96, %s98
    %p105 = scmp.eq.s32.totalorder %s15, 1
    %p106 = por %p104, %p105
    %p107 = scmp.ne.s32.totalorder %s98, %s99
    %p108 = scmp.eq.s32.totalorder %s15, 0
    %p109 = por %p107, %p108
    %p110 = scmp.ne.s32.totalorder %s98, %s99
    %p111 = scmp.eq.s32.totalorder %s16, 1
    %p112 = por %p110, %p111
    %p114 = scmp.ne.s32.totalorder %s99, %s113
    %p115 = scmp.eq.s32.totalorder %s16, 0
    %p116 = por %p114, %p115
    %s117 = ssub.s32 %s10, %s17
    %p118 = scmp.eq.s32.totalorder %s117, 0
    %s120 = sadd.s32 %s119, 1
    %s121 = scalar_select %p118, %s119, %s120
    %p124 = pneg %p118
    %p125 = scmp.eq.s32.totalorder %s10, 1
    %p126 = por %p124, %p125
    %p127 = scmp.ne.s32.totalorder %s119, %s122
    %p128 = scmp.eq.s32.totalorder %s10, 0
    %p129 = por %p127, %p128
    %p130 = scmp.ne.s32.totalorder %s119, %s122
    %p131 = scmp.eq.s32.totalorder %s15, 1
    %p132 = por %p130, %p131
    %p133 = scmp.ne.s32.totalorder %s122, %s123
    %p134 = scmp.eq.s32.totalorder %s15, 0
    %p135 = por %p133, %p134
    %p136 = scmp.ne.s32.totalorder %s122, %s123
    %p137 = scmp.eq.s32.totalorder %s16, 1
    %p138 = por %p136, %p137
    %p140 = scmp.ne.s32.totalorder %s123, %s139
    %p141 = scmp.eq.s32.totalorder %s16, 0
    %p142 = por %p140, %p141
    %p143 = scmp.le.s32.totalorder 1, %s10
    %p144 = scmp.lt.s32.totalorder %s10, 3
    %p145 = pnand %p143, %p144
    %p146 = pneg %p145
    // Predicated region
    $region9: #{global_loss.1} parent=5 // pred_check
      _
    $region10: #{global_loss.1} parent=5 // pred_check_branch
      %148 = sbr.rel (%p145) target = $region12
    $region11: #{global_loss.1} parent=5 // pred_region
      %s149 = ssub.s32 %s10, 1
      // Predicated region
      $region13: #{global_loss.1} parent=11 // pred_check
        %p150 = pneg %p109
      $region14: #{global_loss.1} parent=11 // pred_check_branch
        %152 = sbr.rel (%p150) target = $region16
      $region15: #{global_loss.1} parent=11 // pred_region
        _
      $region16: #{global_loss.1} parent=11 // pred_fallthru
        _
    $region12: #{global_loss.1} parent=5 // pred_fallthru
      _
    %p153 = scmp.lt.s32.totalorder %s10, 2
    // Predicated region
    $region17: #{global_loss.1} parent=5 // pred_check
      %p154 = pneg %p153
    $region18: #{global_loss.1} parent=5 // pred_check_branch
      %156 = sbr.rel (%p154) target = $region20
    $region19: #{global_loss.1} parent=5 // pred_region
      // Predicated region
      $region21: #{global_loss.1} parent=19 // pred_check
        %p157 = pneg %p30
      $region22: #{global_loss.1} parent=19 // pred_check_branch
        %159 = sbr.rel (%p157) target = $region24
      $region23: #{global_loss.1} parent=19 // pred_region
        %p160 = scmp.lt.s32.totalorder %s10, 1
        %s161 = scalar_select %p160, %s10, 1
        %s162 = smul.addr %s161, 8
        %s163 = scalar_lea.vmem %s0, %s162
      $region24: #{global_loss.1} parent=19 // pred_fallthru
        _
      // Predicated region
      $region25: #{global_loss.1} parent=19 // pred_check
        %p164 = pneg %p56
      $region26: #{global_loss.1} parent=19 // pred_check_branch
        %166 = sbr.rel (%p164) target = $region28
      $region27: #{global_loss.1} parent=19 // pred_region
        %p167 = scmp.lt.s32.totalorder %s10, 1
        %s168 = scalar_select %p167, %s10, 1
        %s169 = smul.addr %s168, 8
        %s170 = scalar_lea.vmem %s1, %s169
      $region28: #{global_loss.1} parent=19 // pred_fallthru
        _
      // Predicated region
      $region29: #{global_loss.1} parent=19 // pred_check
        %p171 = pneg %p82
      $region30: #{global_loss.1} parent=19 // pred_check_branch
        %173 = sbr.rel (%p171) target = $region32
      $region31: #{global_loss.1} parent=19 // pred_region
        %p174 = scmp.lt.s32.totalorder %s10, 1
        %s175 = scalar_select %p174, %s10, 1
        %s176 = smul.addr %s175, 8
        %s177 = scalar_lea.vmem %s2, %s176
      $region32: #{global_loss.1} parent=19 // pred_fallthru
        _
    $region20: #{global_loss.1} parent=5 // pred_fallthru
      _
    %p178 = scmp.le.s32.totalorder 1, %s10
    %p179 = scmp.lt.s32.totalorder %s10, 3
    %p180 = pnand %p178, %p179
    %p181 = pneg %p180
    // Predicated region
    $region33: #{global_loss.1} parent=5 // pred_check
      _
    $region34: #{global_loss.1} parent=5 // pred_check_branch
      %183 = sbr.rel (%p180) target = $region36
    $region35: #{global_loss.1} parent=5 // pred_region
      %s184 = ssub.s32 %s10, 1
      %p185 = scmp.lt.s32.totalorder %s15, 1
      %s186 = scalar_select %p185, %s15, 1
      %s187 = smul.addr %s186, 8
      %s188 = scalar_lea.vmem %s0, %s187
      %p189 = pneg %p36
      %p190 = pneg %p33
      %p191 = scmp.lt.s32.totalorder %s15, 1
      %s192 = scalar_select %p191, %s15, 1
      %s193 = smul.addr %s192, 8
      %s194 = scalar_lea.vmem %s1, %s193
      %p195 = pneg %p62
      %p196 = pneg %p59
      %p197 = scmp.lt.s32.totalorder %s15, 1
      %s198 = scalar_select %p197, %s15, 1
      %s199 = smul.addr %s198, 8
      %s200 = scalar_lea.vmem %s2, %s199
      %p201 = pneg %p88
      %p202 = pneg %p85
      %p203 = pneg %p109
      %p204 = pneg %p106
      %p205 = pneg %p135
      %p206 = pneg %p132
      %p207 = scmp.lt.s32.totalorder %s15, 1
      %s208 = scalar_select %p207, %s15, 1
      %s209 = smul.addr %s208, 8
      %s210 = scalar_lea.vmem %s4, %s209
      %p211 = scmp.lt.s32.totalorder %s15, 1
      %s212 = scalar_select %p211, %s15, 1
      %s213 = smul.addr %s212, 8
      %s214 = scalar_lea.vmem %s0, %s213
      %p215 = scmp.lt.s32.totalorder %s15, 1
      %s216 = scalar_select %p215, %s15, 1
      %s217 = smul.addr %s216, 8
      %s218 = scalar_lea.vmem %s1, %s217
      %p219 = scmp.lt.s32.totalorder %s15, 1
      %s220 = scalar_select %p219, %s15, 1
      %s221 = smul.addr %s220, 8
      %s222 = scalar_lea.vmem %s2, %s221
      %p223 = scmp.lt.s32.totalorder %s15, 1
      %s224 = scalar_select %p223, %s15, 1
      %s225 = smul.addr %s224, 8
      %s226 = scalar_lea.vmem %s4, %s225
      %v228 = vld [vmem:[%s214] sm:$0xff]
      %v229 = vld [vmem:[%s3] sm:$0xf]
      %v230 = vld [vmem:[%s3 + $0x4] sm:$0x3]
      %v231 = vpack.c.bf16 %v228, %v228
      %v234 = vunpack.c.l.b16 %v229
      %v235 = vunpack.c.l.b16 %v230
      %v236 = vpack.c.b16 %v235, %v234
      %238 = vmatprep.subr.bf16.mxu0 0
      %239 = vmatpush1.bf16.xpose.msra.mxu0 %v236
      %240 = vmatprep.subr.bf16.mxu0 0
      %241 = vmatpush1.bf16.xpose.msra.mxu0 0
      %242 = vmatprep.subr.bf16.mxu0 0
      %243 = vmatpush1.bf16.xpose.msra.mxu0 0
      %244 = vmatprep.subr.bf16.mxu0 0
      %245 = vmatpush1.bf16.xpose.msra.mxu0 0
      %246 = vmatprep.subr.bf16.mxu0 0
      %247 = vmatpush1.bf16.xpose.msra.mxu0 0
      %248 = vmatprep.subr.bf16.mxu0 0
      %249 = vmatpush1.bf16.xpose.msra.mxu0 0
      %250 = vmatprep.subr.bf16.mxu0 0
      %251 = vmatpush1.bf16.xpose.msra.mxu0 0
      %252 = vmatprep.subr.bf16.mxu0 0
      %253 = vmatpush1.bf16.xpose.msra.mxu0 0
      %254 = vmatprep.subr.bf16.mxu0 0
      %255 = vmatpush1.bf16.xpose.msra.mxu0 0
      %256 = vmatprep.subr.bf16.mxu0 0
      %257 = vmatpush1.bf16.xpose.msra.mxu0 0
      %258 = vmatprep.subr.bf16.mxu0 0
      %259 = vmatpush1.bf16.xpose.msra.mxu0 0
      %260 = vmatprep.subr.bf16.mxu0 0
      %261 = vmatpush1.bf16.xpose.msra.mxu0 0
      %262 = vmatprep.subr.bf16.mxu0 0
      %263 = vmatpush1.bf16.xpose.msra.mxu0 0
      %264 = vmatprep.subr.bf16.mxu0 0
      %265 = vmatpush1.bf16.xpose.msra.mxu0 0
      %266 = vmatprep.subr.bf16.mxu0 0
      %267 = vmatpush1.bf16.xpose.msra.mxu0 0
      %268 = vmatprep.subr.bf16.mxu0 0
      %269 = vmatpush1.bf16.xpose.msra.mxu0 0
      %270 = vmatprep.mubr.bf16.mxu0 0
      %271 = vmatmul.mubr.bf16.gmra.mrb[0].mxu0 %v231
      %v272 = vpop.f32.mrb[0].mxu0
      %v273 = vadd.f32 0.0, %v272
      %v274 = vpop.f32.mrb[0].mxu0
      %v275 = vpop.f32.mrb[0].mxu0
      %v276 = vpop.f32.mrb[0].mxu0
      %277 = vdwg.mxu0
      %v278 = vmul.f32 %v273, 10.0
      %v279 = vld [vmem:[%s218] sm:$0xff]
      %v280 = vmul.f32 %v228, %v279
      %281 = vadd.xlane.f32.xlu0 %v280
      %v282 = vpop.xlane.xlu0 %281
      %v283 = vmul.f32 %v282, 10.0
      %v284 = vld [vmem:[%s222] sm:$0xff]
      %v285 = vmul.f32 %v228, %v284
      %286 = vadd.xlane.f32.xlu0 %v285
      %v287 = vpop.xlane.xlu0 %286
      %v288 = vmul.f32 %v287, 10.0
      %s289 = smul.u32 %s15, 8
      %v290 = vlaneseq
      %v291 = vshrl.u32 %v290, 7
      %v292 = vstv %s289
      %v293 = vadd.s32 %v292, %v291
      %v294 = vlaneseq
      %v295 = vand.u32 %v294, 127
      %vm296 = vcmp.lt.s32.totalorder %v295, 0
      %v297 = vsub.s32 0, %v295
      %v298 = vsel %vm296, %v297, %v295
      %v299 = vshrl.u32 %v298, 2
      %v300 = vand.u32 %v298, 3
      %v301 = vsub.s32 0, %v300
      %v302 = vsel %vm296, %v301, %v300
      %vm303 = vcmp.ne.s32.totalorder %v302, 0
      %vm304 = vcmp.lt.s32.totalorder %v302, 0
      %vm305 = vmand %vm304, %vm303
      %v306 = vadd.s32 %v302, 4
      %v307 = vsel %vm305, %v306, %v302
      %vm308 = vcmp.lt.s32.totalorder %v307, 0
      %v309 = vsub.s32 0, %v307
      %v310 = vsel %vm308, %v309, %v307
      %v311 = vshrl.u32 %v310, 1
      %v312 = vand.u32 %v310, 1
      %v313 = vsub.s32 0, %v312
      %v314 = vsel %vm308, %v313, %v312
      %vm315 = vcmp.ne.s32.totalorder %v314, 0
      %vm316 = vcmp.lt.s32.totalorder %v314, 0
      %vm317 = vmand %vm316, %vm315
      %v318 = vadd.s32 %v314, 2
      %v319 = vsel %vm317, %v318, %v314
      %vm320 = vcmp.lt.s32.totalorder %v293, 0
      %v321 = vsub.s32 0, %v293
      %v322 = vsel %vm320, %v321, %v293
      %v323 = vshrl.u32 %v322, 2
      %v324 = vand.u32 %v322, 3
      %v325 = vsub.s32 0, %v324
      %v326 = vsel %vm320, %v325, %v324
      %vm327 = vcmp.ne.s32.totalorder %v326, 0
      %vm328 = vcmp.lt.s32.totalorder %v326, 0
      %vm329 = vmand %vm328, %vm327
      %v330 = vadd.s32 %v326, 4
      %v331 = vsel %vm329, %v330, %v326
      %vm332 = vcmp.lt.s32.totalorder %v331, 0
      %v333 = vsub.s32 0, %v331
      %v334 = vsel %vm332, %v333, %v331
      %v335 = vshrl.u32 %v334, 1
      %v336 = vand.u32 %v334, 1
      %v337 = vsub.s32 0, %v336
      %v338 = vsel %vm332, %v337, %v336
      %vm339 = vcmp.ne.s32.totalorder %v338, 0
      %vm340 = vcmp.lt.s32.totalorder %v338, 0
      %vm341 = vmand %vm340, %vm339
      %v342 = vadd.s32 %v338, 2
      %v343 = vsel %vm341, %v342, %v338
      %vm344 = vcmp.ne.s32.totalorder %v319, %v343
      %v345 = vsel %vm344, %v278, -1e+30
      %vm346 = vcmask 97280
      %v347 = vsel %vm346, %v345, -inf
      %348 = vmax.xlane.f32.xlu0 %v347
      %v349 = vpop.xlane.xlu0 %348
      %v350 = vsub.f32 %v345, %v349
      %v351 = vmul.f32 %v350, 1.442695
      %v352 = vpow.pop %v351
      %v353 = vsel %vm346, %v352, 0.0
      %354 = vadd.xlane.f32.xlu0 %v353
      %v355 = vpop.xlane.xlu0 %354
      %v356 = vmax.f32 %v349, %v283
      %v357 = vsub.f32 %v283, %v356
      %v358 = vmul.f32 %v357, 1.442695
      %v359 = vpow.pop %v358
      %v360 = vsub.f32 %v349, %v356
      %v361 = vmul.f32 %v360, 1.442695
      %v362 = vpow.pop %v361
      %v363 = vmul.f32 %v355, %v362
      %v364 = vadd.f32 %v359, %v363
      %v365 = vlog2.pop %v364
      %v366 = vmul.f32 %v365, 0.6931472
      %v367 = vadd.f32 %v356, %v366
      %v368 = vsub.f32 %v367, %v283
      %v369 = vadd.f32 %v368, 0.0
      %v370 = vmax.f32 %v349, %v288
      %v371 = vsub.f32 %v288, %v370
      %v372 = vmul.f32 %v371, 1.442695
      %v373 = vpow.pop %v372
      %v374 = vsub.f32 %v349, %v370
      %v375 = vmul.f32 %v374, 1.442695
      %v376 = vpow.pop %v375
      %v377 = vmul.f32 %v355, %v376
      %v378 = vadd.f32 %v373, %v377
      %v379 = vlog2.pop %v378
      %v380 = vmul.f32 %v379, 0.6931472
      %v381 = vadd.f32 %v370, %v380
      %v382 = vsub.f32 %v381, %v288
      %v383 = vadd.f32 %v369, %v382
      %vm384 = vcmp.lt.s32.totalorder %v293, 12
      %v385 = vsel %vm384, 1, 0
      %v386 = vcvt.s32.f32 %v385
      %v387 = vmul.f32 %v383, %v386
      %vm388 = vcmask 7168
      %v389 = vsel %vm388, %v387, 0.0
      %390 = vadd.xlane.f32.xlu0 %v389
      %v391 = vpop.xlane.xlu0 %390
      %v392 = vrot.slane %v391, 4
      %v393 = vadd.f32 %v391, %v392
      %v394 = vrot.slane %v393, 2
      %v395 = vadd.f32 %v393, %v394
      %v396 = vrot.slane %v395, 1
      %v397 = vadd.f32 %v395, %v396
      %s398 = vtos %v397
      %vm399 = vcmp.eq.s32.totalorder %v291, 0
      %vm400 = vcmp.eq.s32.totalorder %v295, 0
      %vm401 = vmand %vm399, %vm400
      %v402 = vstv %s398
      %v403 = vsel %vm401, %v402, 0.0
      %404 = vst [vmem:[%s226] sm:$0xff] %v403
      %p405 = scmp.lt.s32.totalorder %s15, 1
      %s406 = scalar_select %p405, %s15, 1
      %s407 = smul.addr %s406, 8
      %s408 = scalar_lea.vmem %s4, %s407
      // Predicated region
      $region37: #{global_loss.1} parent=35 // pred_check
        %p409 = pneg %p132
      $region38: #{global_loss.1} parent=35 // pred_check_branch
        %411 = sbr.rel (%p409) target = $region40
      $region39: #{global_loss.1} parent=35 // pred_region
        _
      $region40: #{global_loss.1} parent=35 // pred_fallthru
        _
    $region36: #{global_loss.1} parent=5 // pred_fallthru
      _
    %p412 = scmp.le.s32.totalorder 2, %s10
    // Predicated region
    $region41: #{global_loss.1} parent=5 // pred_check
      %p413 = pneg %p412
    $region42: #{global_loss.1} parent=5 // pred_check_branch
      %415 = sbr.rel (%p413) target = $region44
    $region43: #{global_loss.1} parent=5 // pred_region
      %s416 = ssub.s32 %s10, 2
      // Predicated region
      $region45: #{global_loss.1} parent=43 // pred_check
        %p417 = pneg %p138
      $region46: #{global_loss.1} parent=43 // pred_check_branch
        %419 = sbr.rel (%p417) target = $region48
      $region47: #{global_loss.1} parent=43 // pred_region
        %p420 = scmp.lt.s32.totalorder %s16, 1
        %s421 = scalar_select %p420, %s16, 1
        %s422 = smul.addr %s421, 8
        %s423 = scalar_lea.vmem %s4, %s422
      $region48: #{global_loss.1} parent=43 // pred_fallthru
        _
    $region44: #{global_loss.1} parent=5 // pred_fallthru
      _
  $region6: #{global_loss.1} parent=0 // loop_footer
    %s14 = sadd.s32 1, %s10
  $region7: #{global_loss.1} parent=0 // loop_footer_branch
    %9 = sbr.rel target = $region3
  $region8: #{global_loss.1} parent=0 // loop_exit
    _

</llo_original>
